<compile_context>
chip_gen: v7x
topology: tpu7x:2x2x1
jax: 0.10.0
libtpu: 0.0.40
codegen_flags: <defaults>
</compile_context>

<pallas_src>
import functools

import jax
import jax.numpy as jnp
from jax.experimental import pallas as pl
from jax.experimental.pallas import tpu as pltpu

IGNORE_INDEX = -100  # PyTorch F.nll_loss default


def _device_kind():
    try:
        return jax.devices()[0].device_kind.lower()
    except Exception:
        return ""


def _nll_loss_kernel(pred_ref, tgt_ref, sum_ref, cnt_ref, *,
                     n_total, tile_rows, tiles_per_core, upcast_early):
    core = pl.program_id(0)   # "parallel" axis (per-TensorCore on v7x)
    i = pl.program_id(1)      # "arbitrary" reduction axis over row tiles

    # Output blocks are resident across the inner axis (block index depends only on
    # `core`), so they double as the accumulators.
    @pl.when(i == 0)
    def _():
        sum_ref[...] = jnp.zeros_like(sum_ref)
        cnt_ref[...] = jnp.zeros_like(cnt_ref)

    pred = pred_ref[...]                       # (TN, C), input dtype (bf16 stays bf16 on v6e/v7x)
    if upcast_early:
        pred = pred.astype(jnp.float32)        # v5e/older: no bf16 VALU (no-op for f32 inputs)
    tgt = tgt_ref[...]                         # (TN, 1) int32
    tn, c = pred.shape

    # Logical (global) tile index for this grid point; clamped index_maps may re-read
    # the last tile, but these row ids stay unclamped so duplicates mask to zero.
    tile_idx = core * tiles_per_core + i
    row_ids = jax.lax.broadcasted_iota(jnp.int32, (tn, 1), 0) + tile_idx * tile_rows
    valid = (row_ids < n_total) & (tgt != IGNORE_INDEX)          # (TN, 1) bool

    # One-hot select of the target column. No '& valid' on the (TN,C) tensor:
    # ignore_index (-100) never matches a column id, and padded rows are masked below.
    col_ids = jax.lax.broadcasted_iota(jnp.int32, (tn, c), 1)
    onehot = col_ids == tgt                                       # (TN, C) bool

    # Lane (XLU) reduce; exact in bf16 since each row has at most one nonzero term.
    picked = jnp.sum(jnp.where(onehot, pred, 0.0), axis=-1, keepdims=True)   # (TN, 1)
    # Row mask AFTER the reduce, with a select so NaN/Inf garbage in padded rows
    # of a partial/clamped tile cannot propagate.
    picked = jnp.where(valid, picked.astype(jnp.float32), 0.0)

    sum_ref[...] += jnp.sum(picked)
    cnt_ref[...] += jnp.sum(valid.astype(jnp.float32))


def nll_loss_pallas(pred, target, *, max_tile_rows=None, force_cores=None):
    """F.nll_loss(pred, target): mean of -pred[i, target[i]] over non-ignored rows.

    pred: (N, C) log-probabilities (float32 or bfloat16); target: (N,) int class ids.
    """
    n, c = pred.shape
    itemsize = jnp.dtype(pred.dtype).itemsize

    kind = _device_kind()
    is_v7 = ("v7" in kind) or ("7x" in kind)
    pre_v6 = any(v in kind for v in ("v2", "v3", "v4", "v5"))

    # Per-generation budgets: big tiles to amortize per-step overhead, but keep the
    # double-buffered footprint comfortably inside physical VMEM.
    tile_budget = (8 if is_v7 else 14) * 1024 * 1024          # bytes per pred tile
    vmem_limit = (32 if is_v7 else 56) * 1024 * 1024

    rows_by_vmem = max(8, (tile_budget // max(1, c * itemsize)) // 8 * 8)
    if max_tile_rows is not None:
        rows_by_vmem = max(8, (min(max_tile_rows, rows_by_vmem) // 8) * 8)
    tn = n if n <= rows_by_vmem else rows_by_vmem             # full dim (any N) or multiple of 8
    num_tiles = pl.cdiv(n, tn)

    # Megacore split (v7x only); never more cores than tiles.
    num_cores = force_cores if force_cores is not None else (2 if is_v7 else 1)
    num_cores = max(1, min(num_cores, num_tiles))
    tiles_per_core = pl.cdiv(num_tiles, num_cores)

    last_tile = num_tiles - 1

    def row_block_map(co, i):
        # Clamp so a core's overhang tile (odd num_tiles split 2 ways) stays in bounds;
        # the kernel masks those rows out via the unclamped logical row ids.
        return (jnp.minimum(co * tiles_per_core + i, last_tile), 0)

    upcast_early = pre_v6 or pred.dtype == jnp.float32

    target2d = target.astype(jnp.int32).reshape(n, 1)
    kernel = functools.partial(
        _nll_loss_kernel,
        n_total=n, tile_rows=tn, tiles_per_core=tiles_per_core, upcast_early=upcast_early)

    sums, cnts = pl.pallas_call(
        kernel,
        out_shape=(jax.ShapeDtypeStruct((num_cores, 8, 128), jnp.float32),
                   jax.ShapeDtypeStruct((num_cores, 8, 128), jnp.float32)),
        grid_spec=pltpu.PrefetchScalarGridSpec(
            num_scalar_prefetch=0,
            grid=(num_cores, tiles_per_core),
            in_specs=[
                pl.BlockSpec((tn, c), row_block_map),   # pred tile (double-buffered DMA)
                pl.BlockSpec((tn, 1), row_block_map),   # matching target rows
            ],
            out_specs=[
                pl.BlockSpec((1, 8, 128), lambda co, i: (co, 0, 0)),  # per-core partial sum
                pl.BlockSpec((1, 8, 128), lambda co, i: (co, 0, 0)),  # per-core valid count
            ],
        ),
        compiler_params=pltpu.CompilerParams(
            dimension_semantics=("parallel", "arbitrary"),
            vmem_limit_bytes=vmem_limit,
        ),
        cost_estimate=pl.CostEstimate(
            flops=2 * n * c,
            transcendentals=0,
            bytes_accessed=n * c * itemsize + n * 4 + 2 * num_cores * 8 * 128 * 4,
        ),
    )(pred, target2d)

    total = jnp.sum(sums[:, 0, 0])
    count = jnp.sum(cnts[:, 0, 0])
    # count == 0 (all targets ignored) -> NaN, matching PyTorch's behavior.
    return -(total / count)


if __name__ == "__main__":
    key = jax.random.PRNGKey(0)
    k1, k2, k3, k4 = jax.random.split(key, 4)

    # Case 1: small single-tile, f32 (shapes implied by the module: batch=8, classes=32).
    N, C = 8, 32
    logits = jax.random.normal(k1, (N, C), dtype=jnp.float32)
    pred = jax.nn.log_softmax(logits, axis=-1)
    target = jax.random.randint(k2, (N,), 0, C, dtype=jnp.int32)
    loss = nll_loss_pallas(pred, target)
    jax.block_until_ready(loss)
    ref = -jnp.mean(pred[jnp.arange(N), target])
    assert jnp.allclose(loss, ref, atol=1e-6, rtol=1e-6), (loss, ref)

    # Case 2: multi-tile grid, forced 2-"core" split with an overhang (clamped) tile,
    # partial last tile, and an ignore_index(-100) entry.
    N2, C2 = 50, 160
    logits2 = jax.random.normal(k3, (N2, C2), dtype=jnp.float32)
    pred2 = jax.nn.log_softmax(logits2, axis=-1)
    target2 = jax.random.randint(k4, (N2,), 0, C2, dtype=jnp.int32)
    target2 = target2.at[7].set(IGNORE_INDEX)
    loss2 = nll_loss_pallas(pred2, target2, max_tile_rows=8, force_cores=2)
    jax.block_until_ready(loss2)
    keep = target2 != IGNORE_INDEX
    safe_tgt = jnp.clip(target2, 0, C2 - 1)
    ref2 = -jnp.sum(jnp.where(keep, pred2[jnp.arange(N2), safe_tgt], 0.0)) / jnp.sum(keep)
    assert jnp.allclose(loss2, ref2, atol=1e-5, rtol=1e-5), (loss2, ref2)

    # Case 3: bf16 log-probs go through the kernel with no wrapper-side upcast
    # (compute stays bf16 on v6e/v7x; exact pick so the gather reference matches).
    pred_bf16 = pred2.astype(jnp.bfloat16)
    loss3 = nll_loss_pallas(pred_bf16, target2, max_tile_rows=16)
    jax.block_until_ready(loss3)
    ref3 = -jnp.sum(
        jnp.where(keep, pred_bf16.astype(jnp.float32)[jnp.arange(N2), safe_tgt], 0.0)
    ) / jnp.sum(keep)
    assert jnp.allclose(loss3, ref3, atol=2e-2, rtol=2e-2), (loss3, ref3)

    print("KERNEL_OK")
</pallas_src>

<mosaic_0001>
module attributes {stable_mosaic.version = 11 : i64} {
  func.func @_nll_loss_kernel(%arg0: i32, %arg1: i32, %arg2: memref<8x32xf32, #tpu.memory_space<vmem>>, %arg3: memref<8x1xi32, #tpu.memory_space<vmem>>, %arg4: memref<1x8x128xf32, #tpu.memory_space<vmem>>, %arg5: memref<1x8x128xf32, #tpu.memory_space<vmem>>) attributes {dimension_semantics = [#tpu.dimension_semantics<parallel>, #tpu.dimension_semantics<arbitrary>], iteration_bounds = array<i64: 1, 1>, scalar_prefetch = 0 : i64, scratch_operands = 0 : i64, tpu.core_type = #tpu.core_type<tc>, window_params = [{transform_indices = @transform_0, window_bounds = array<i64: 8, 32>}, {transform_indices = @transform_1, window_bounds = array<i64: 8, 1>}, {transform_indices = @transform_2, window_bounds = array<i64: 1, 8, 128>}, {transform_indices = @transform_3, window_bounds = array<i64: 1, 8, 128>}]} {
    %c0_i32 = arith.constant 0 : i32
    %0 = arith.cmpi eq, %arg1, %c0_i32 : i32
    %1 = arith.extui %0 : i1 to i32
    %c0_i32_0 = arith.constant 0 : i32
    %2 = arith.cmpi ne, %1, %c0_i32_0 : i32
    scf.if %2 {
      %cst_21 = arith.constant 0.000000e+00 : f32
      %43 = vector.broadcast %cst_21 : f32 to vector<1x8x128xf32>
      %c0_22 = arith.constant 0 : index
      %c0_23 = arith.constant 0 : index
      %c0_24 = arith.constant 0 : index
      %44 = vector.load %arg4[%c0_22, %c0_23, %c0_24] : memref<1x8x128xf32, #tpu.memory_space<vmem>>, vector<1x8x128xf32>
      tpu.vector_store %arg4[%c0_22, %c0_23, %c0_24], %43 {strides = array<i32>} : memref<1x8x128xf32, #tpu.memory_space<vmem>>, vector<1x8x128xf32>,
      %cst_25 = arith.constant 0.000000e+00 : f32
      %45 = vector.broadcast %cst_25 : f32 to vector<1x8x128xf32>
      %c0_26 = arith.constant 0 : index
      %c0_27 = arith.constant 0 : index
      %c0_28 = arith.constant 0 : index
      %46 = vector.load %arg5[%c0_26, %c0_27, %c0_28] : memref<1x8x128xf32, #tpu.memory_space<vmem>>, vector<1x8x128xf32>
      tpu.vector_store %arg5[%c0_26, %c0_27, %c0_28], %45 {strides = array<i32>} : memref<1x8x128xf32, #tpu.memory_space<vmem>>, vector<1x8x128xf32>,
    } else {
    }
    %c0 = arith.constant 0 : index
    %c0_1 = arith.constant 0 : index
    %3 = vector.load %arg2[%c0, %c0_1] : memref<8x32xf32, #tpu.memory_space<vmem>>, vector<8x32xf32>
    %c0_2 = arith.constant 0 : index
    %c0_3 = arith.constant 0 : index
    %4 = vector.load %arg3[%c0_2, %c0_3] : memref<8x1xi32, #tpu.memory_space<vmem>>, vector<8x1xi32>
    %c1_i32 = arith.constant 1 : i32
    %5 = arith.muli %arg0, %c1_i32 : i32
    %6 = arith.addi %5, %arg1 : i32
    %7 = tpu.iota {dimensions = array<i32: 0>} : vector<8x1xi32>
    %c8_i32 = arith.constant 8 : i32
    %8 = arith.muli %6, %c8_i32 : i32
    %9 = vector.broadcast %8 : i32 to vector<8x1xi32>
    %10 = arith.addi %7, %9 : vector<8x1xi32>
    %c8_i32_4 = arith.constant 8 : i32
    %11 = vector.broadcast %c8_i32_4 : i32 to vector<8x1xi32>
    %12 = arith.cmpi slt, %10, %11 : vector<8x1xi32>
    %c-100_i32 = arith.constant -100 : i32
    %13 = vector.broadcast %c-100_i32 : i32 to vector<8x1xi32>
    %14 = arith.cmpi ne, %4, %13 : vector<8x1xi32>
    %15 = arith.andi %12, %14 : vector<8x1xi1>
    %16 = tpu.iota {dimensions = array<i32: 1>} : vector<8x32xi32>
    %17 = vector.broadcast %4 : vector<8x1xi32> to vector<8x32xi32>
    %18 = arith.cmpi eq, %16, %17 : vector<8x32xi32>
    %cst = arith.constant 0.000000e+00 : f32
    %19 = vector.broadcast %cst : f32 to vector<8x32xf32>
    %20 = arith.select %18, %3, %19 : vector<8x32xi1>, vector<8x32xf32>
    %cst_5 = arith.constant dense<0.000000e+00> : vector<8xf32>
    %21 = vector.multi_reduction <add>, %20, %cst_5 [1] : vector<8x32xf32> to vector<8xf32>
    %22 = vector.shape_cast %21 : vector<8xf32> to vector<8x1xf32>
    %cst_6 = arith.constant 0.000000e+00 : f32
    %23 = vector.broadcast %cst_6 : f32 to vector<8x1xf32>
    %24 = arith.select %15, %22, %23 : vector<8x1xi1>, vector<8x1xf32>
    %c0_7 = arith.constant 0 : index
    %c0_8 = arith.constant 0 : index
    %c0_9 = arith.constant 0 : index
    %25 = vector.load %arg4[%c0_7, %c0_8, %c0_9] : memref<1x8x128xf32, #tpu.memory_space<vmem>>, vector<1x8x128xf32>
    %26 = vector.shape_cast %24 : vector<8x1xf32> to vector<1x8x1xf32>
    %cst_10 = arith.constant dense<0.000000e+00> : vector<1xf32>
    %27 = vector.multi_reduction <add>, %26, %cst_10 [1, 2] : vector<1x8x1xf32> to vector<1xf32>
    %28 = vector.shape_cast %27 : vector<1xf32> to vector<1x1x1xf32>
    %29 = vector.extract %28[0, 0, 0] : f32 from vector<1x1x1xf32>
    %30 = vector.broadcast %29 : f32 to vector<1x8x128xf32>
    %31 = arith.addf %25, %30 : vector<1x8x128xf32>
    %c0_11 = arith.constant 0 : index
    %c0_12 = arith.constant 0 : index
    %c0_13 = arith.constant 0 : index
    %32 = vector.load %arg4[%c0_11, %c0_12, %c0_13] : memref<1x8x128xf32, #tpu.memory_space<vmem>>, vector<1x8x128xf32>
    tpu.vector_store %arg4[%c0_11, %c0_12, %c0_13], %31 {strides = array<i32>} : memref<1x8x128xf32, #tpu.memory_space<vmem>>, vector<1x8x128xf32>,
    %c0_14 = arith.constant 0 : index
    %c0_15 = arith.constant 0 : index
    %c0_16 = arith.constant 0 : index
    %33 = vector.load %arg5[%c0_14, %c0_15, %c0_16] : memref<1x8x128xf32, #tpu.memory_space<vmem>>, vector<1x8x128xf32>
    %34 = arith.extui %15 : vector<8x1xi1> to vector<8x1xi32>
    %35 = arith.sitofp %34 : vector<8x1xi32> to vector<8x1xf32>
    %36 = vector.shape_cast %35 : vector<8x1xf32> to vector<1x8x1xf32>
    %cst_17 = arith.constant dense<0.000000e+00> : vector<1xf32>
    %37 = vector.multi_reduction <add>, %36, %cst_17 [1, 2] : vector<1x8x1xf32> to vector<1xf32>
    %38 = vector.shape_cast %37 : vector<1xf32> to vector<1x1x1xf32>
    %39 = vector.extract %38[0, 0, 0] : f32 from vector<1x1x1xf32>
    %40 = vector.broadcast %39 : f32 to vector<1x8x128xf32>
    %41 = arith.addf %33, %40 : vector<1x8x128xf32>
    %c0_18 = arith.constant 0 : index
    %c0_19 = arith.constant 0 : index
    %c0_20 = arith.constant 0 : index
    %42 = vector.load %arg5[%c0_18, %c0_19, %c0_20] : memref<1x8x128xf32, #tpu.memory_space<vmem>>, vector<1x8x128xf32>
    tpu.vector_store %arg5[%c0_18, %c0_19, %c0_20], %41 {strides = array<i32>} : memref<1x8x128xf32, #tpu.memory_space<vmem>>, vector<1x8x128xf32>,
    return
  }
  func.func @transform_0(%arg0: i32, %arg1: i32) -> (i32, i32) {
    %c1_i32 = arith.constant 1 : i32
    %0 = arith.muli %arg0, %c1_i32 : i32
    %1 = arith.addi %0, %arg1 : i32
    %c0_i32 = arith.constant 0 : i32
    %2 = arith.minsi %1, %c0_i32 : i32
    %c0_i32_0 = arith.constant 0 : i32
    %c0_i32_1 = arith.constant 0 : i32
    return %2, %c0_i32_0 : i32, i32
  }
  func.func @transform_1(%arg0: i32, %arg1: i32) -> (i32, i32) {
    %c1_i32 = arith.constant 1 : i32
    %0 = arith.muli %arg0, %c1_i32 : i32
    %1 = arith.addi %0, %arg1 : i32
    %c0_i32 = arith.constant 0 : i32
    %2 = arith.minsi %1, %c0_i32 : i32
    %c0_i32_0 = arith.constant 0 : i32
    %c0_i32_1 = arith.constant 0 : i32
    return %2, %c0_i32_0 : i32, i32
  }
  func.func @transform_2(%arg0: i32, %arg1: i32) -> (i32, i32, i32) {
    %c0_i32 = arith.constant 0 : i32
    %c0_i32_0 = arith.constant 0 : i32
    %c0_i32_1 = arith.constant 0 : i32
    return %arg0, %c0_i32, %c0_i32_0 : i32, i32, i32
  }
  func.func @transform_3(%arg0: i32, %arg1: i32) -> (i32, i32, i32) {
    %c0_i32 = arith.constant 0 : i32
    %c0_i32_0 = arith.constant 0 : i32
    %c0_i32_1 = arith.constant 0 : i32
    return %arg0, %c0_i32, %c0_i32_0 : i32, i32, i32
  }
}

</mosaic_0001>

<llo_original>
// kernel: tpu_custom_call.1
$region0: #{tpu_custom_call.1}
  #allocation0 [shape = 'u32[]', space=smem, size = 0x4, offset = 0x4, fixed_abs, tag = 'smem constant byte address 0x4 - core index']
  #allocation1 [shape = 'u32[144,128]{1,0:T(1,128)}', space=vmem, size = 0x12000, scoped, tag = 'internal scratch']
  %s0 = inlined_call_operand.vmem [shape: f32[8,32], index: 0, kind: input, shape index: {}]
  %s1 = inlined_call_operand.vmem [shape: s32[8,1], index: 1, kind: input, shape index: {}]
  %s2 = inlined_call_operand.hbm [shape: f32[1,8,128], index: 2, kind: output, shape index: {0}]
  %s3 = inlined_call_operand.hbm [shape: f32[1,8,128], index: 3, kind: output, shape index: {1}]
  %4 = xla_tuple %s2, %s3
  %s5 = sld [smem:[#allocation0]]
  $region30: #{tpu_custom_call.1} parent=0
    _
  %s7 = ssub.s32 1, %s5
  %s8 = scalar_select 0, %s7, %s5
  $region1: #{tpu_custom_call.1} parent=0
    #allocation2 [shape = 'u8[4096]{0}', space=vmem, size = 0x1000, scoped, tag = 'output window, operand 0, single buffered']
    #allocation3 [shape = 's32[1]{0}', space=sflag, size = 0x4, scoped, tag = 'scoped memory for tpu_custom_call.1']
    #allocation4 [shape = 'u8[4096]{0}', space=vmem, size = 0x1000, scoped, tag = 'output window, operand 1, single buffered']
    #allocation5 [shape = 's32[1]{0}', space=sflag, size = 0x4, scoped, tag = 'scoped memory for tpu_custom_call.1']
    %9 = vsyncpa [#allocation3], 0
    %10 = vsyncpa [#allocation5], 0
    // Predicated region
    $region2: #{tpu_custom_call.1} parent=1 // pred_check
      _
    $region3: #{tpu_custom_call.1} parent=1 // pred_check_branch
      %12 = sbr.rel (0) target = $region5
    $region4: #{tpu_custom_call.1} parent=1 // pred_region
      %s13 = sadd.s32 0, 0
      %p14 = scmp.lt.s32.totalorder %s13, 0
      %s15 = scalar_select %p14, %s13, 0
      %p16 = scmp.lt.s32.totalorder %s15, 0
      %s17 = scalar_select %p16, %s15, 0
      %s18 = smul.addr %s17, 8
      %s19 = scalar_lea.vmem %s0, %s18
      %s20 = sadd.s32 0, 0
      %p21 = scmp.lt.s32.totalorder %s20, 0
      %s22 = scalar_select %p21, %s20, 0
    $region5: #{tpu_custom_call.1} parent=1 // pred_fallthru
      _
    // Predicated region
    $region6: #{tpu_custom_call.1} parent=1 // pred_check
      _
    $region7: #{tpu_custom_call.1} parent=1 // pred_check_branch
      %24 = sbr.rel (0) target = $region9
    $region8: #{tpu_custom_call.1} parent=1 // pred_region
      %s25 = sadd.s32 0, 0
      %p26 = scmp.lt.s32.totalorder %s25, 0
      %s27 = scalar_select %p26, %s25, 0
      %p28 = scmp.lt.s32.totalorder %s27, 0
      %s29 = scalar_select %p28, %s27, 0
      %s30 = smul.addr %s29, 8
      %s31 = scalar_lea.vmem %s1, %s30
      %s32 = sadd.s32 0, 0
      %p33 = scmp.lt.s32.totalorder %s32, 0
      %s34 = scalar_select %p33, %s32, 0
    $region9: #{tpu_custom_call.1} parent=1 // pred_fallthru
      _
    %s35 = sadd.s32 0, 0
    %p36 = scmp.lt.s32.totalorder %s35, 0
    %s37 = scalar_select %p36, %s35, 0
    %p38 = scmp.lt.s32.totalorder %s37, 0
    %s39 = scalar_select %p38, %s37, 0
    %s40 = smul.addr %s39, 8
    %s41 = scalar_lea.vmem %s0, %s40
    %s42 = sadd.s32 0, 0
    %p43 = scmp.lt.s32.totalorder %s42, 0
    %s44 = scalar_select %p43, %s42, 0
    %p45 = scmp.lt.s32.totalorder %s44, 0
    %s46 = scalar_select %p45, %s44, 0
    %s47 = smul.addr %s46, 8
    %s48 = scalar_lea.vmem %s1, %s47
    %s49 = sadd.s32 0, 0
    %p50 = scmp.lt.s32.totalorder %s49, 0
    %s51 = scalar_select %p50, %s49, 0
    %p52 = scmp.lt.s32.totalorder %s51, 0
    %s53 = scalar_select %p52, %s51, 0
    %s54 = smul.addr %s53, 8
    %s55 = scalar_lea.vmem %s0, %s54
    %s56 = sadd.s32 0, 0
    %p57 = scmp.lt.s32.totalorder %s56, 0
    %s58 = scalar_select %p57, %s56, 0
    %s59 = sadd.s32 0, 0
    %p60 = scmp.lt.s32.totalorder %s59, 0
    %s61 = scalar_select %p60, %s59, 0
    %p62 = scmp.lt.s32.totalorder %s61, 0
    %s63 = scalar_select %p62, %s61, 0
    %s64 = smul.addr %s63, 8
    %s65 = scalar_lea.vmem %s1, %s64
    %s66 = sadd.s32 0, 0
    %p67 = scmp.lt.s32.totalorder %s66, 0
    %s68 = scalar_select %p67, %s66, 0
    %p69 = scmp.eq.s32.totalorder 0, 0
    // Predicated region
    $region10: #{tpu_custom_call.1} parent=1 // pred_check
      %p70 = pneg %p69
    $region11: #{tpu_custom_call.1} parent=1 // pred_check_branch
      %72 = sbr.rel (%p70) target = $region13
    $region12: #{tpu_custom_call.1} parent=1 // pred_region
      %73 = vst [vmem:[#allocation2] sm:$0xff] 0.0
      %74 = vst [vmem:[#allocation4] sm:$0xff] 0.0
    $region13: #{tpu_custom_call.1} parent=1 // pred_fallthru
      _
    %v75 = vld [vmem:[%s55] sm:$0xff]
    %v76 = vld [vmem:[%s65] sm:$0xff]
    %s77 = sadd.s32 0, 0
    %v78 = vlaneseq
    %v79 = vshrl.u32 %v78, 7
    %s80 = smul.u32 %s77, 8
    %v81 = vstv %s80
    %v82 = vadd.s32 %v79, %v81
    %vm83 = vcmp.lt.s32.totalorder %v82, 8
    %vm84 = vcmp.ne.s32.totalorder %v76, 4294967196
    %vm85 = vmand %vm83, %vm84
    %v86 = vlaneseq
    %v87 = vand.u32 %v86, 127
    %88 = vset.pattern.permute.xlu0 0
    %89 = vperm.xlu0 %88, %v76
    %v90 = vpop.permute.xlu0 %89
    %vm91 = vcmp.eq.s32.totalorder %v87, %v90
    %v92 = vsel %vm91, %v75, 0.0
    %vm93 = vcmask 261120
    %v94 = vsel %vm93, %v92, 0.0
    %95 = vadd.xlane.f32.xlu0 %v94
    %v96 = vpop.xlane.xlu0 %95
    %v97 = vsel %vm85, %v96, 0.0
    %v98 = vld [vmem:[#allocation2] sm:$0xff]
    %vm99 = vcmask 7168
    %v100 = vsel %vm99, %v97, 0.0
    %101 = vadd.xlane.f32.xlu0 %v100
    %v102 = vpop.xlane.xlu0 %101
    %v103 = vrot.slane %v102, 4
    %v104 = vadd.f32 %v102, %v103
    %v105 = vrot.slane %v104, 2
    %v106 = vadd.f32 %v104, %v105
    %v107 = vrot.slane %v106, 1
    %v108 = vadd.f32 %v106, %v107
    %s109 = vtos %v108
    %v110 = vstv %s109
    %v111 = vadd.f32 %v98, %v110
    %112 = vst [vmem:[#allocation2] sm:$0xff] %v111
    %v113 = vld [vmem:[#allocation4] sm:$0xff]
    %v114 = vsel %vm85, 1, 0
    %v115 = vcvt.s32.f32 %v114
    %v116 = vsel %vm99, %v115, 0.0
    %117 = vadd.xlane.f32.xlu0 %v116
    %v118 = vpop.xlane.xlu0 %117
    %v119 = vrot.slane %v118, 4
    %v120 = vadd.f32 %v118, %v119
    %v121 = vrot.slane %v120, 2
    %v122 = vadd.f32 %v120, %v121
    %v123 = vrot.slane %v122, 1
    %v124 = vadd.f32 %v122, %v123
    %s125 = vtos %v124
    %v126 = vstv %s125
    %v127 = vadd.f32 %v113, %v126
    %128 = vst [vmem:[#allocation4] sm:$0xff] %v127
    // Predicated region
    $region14: #{tpu_custom_call.1} parent=1 // pred_check
      _
    $region15: #{tpu_custom_call.1} parent=1 // pred_check_branch
      %130 = sbr.rel (0) target = $region17
    $region16: #{tpu_custom_call.1} parent=1 // pred_region
      %s132 = ssub.s32 128, 128
      %133 = vsyncadd [#allocation3], %s132
      %s135 = sshll.u32 [#allocation2], 4
      %s136 = int_to_ptr.vmem [resolvable:$true] %s135
      %138 = dma.vmem_to_hbm [thread:$0]  %s136, 128, %s2, [#allocation3]
    $region17: #{tpu_custom_call.1} parent=1 // pred_fallthru
      _
    // Predicated region
    $region18: #{tpu_custom_call.1} parent=1 // pred_check
      _
    $region19: #{tpu_custom_call.1} parent=1 // pred_check_branch
      %140 = sbr.rel (0) target = $region21
    $region20: #{tpu_custom_call.1} parent=1 // pred_region
      %s142 = ssub.s32 128, 128
      %143 = vsyncadd [#allocation5], %s142
      %s145 = sshll.u32 [#allocation4], 4
      %s146 = int_to_ptr.vmem [resolvable:$true] %s145
      %148 = dma.vmem_to_hbm [thread:$0]  %s146, 128, %s3, [#allocation5]
    $region21: #{tpu_custom_call.1} parent=1 // pred_fallthru
      _
    // Predicated region
    $region22: #{tpu_custom_call.1} parent=1 // pred_check
      _
    $region23: #{tpu_custom_call.1} parent=1 // pred_check_branch
      %150 = sbr.rel (0) target = $region25
    $region24: #{tpu_custom_call.1} parent=1 // pred_region
      %151 = dma.done [#allocation3], 128
    $region25: #{tpu_custom_call.1} parent=1 // pred_fallthru
      _
    // Predicated region
    $region26: #{tpu_custom_call.1} parent=1 // pred_check
      _
    $region27: #{tpu_custom_call.1} parent=1 // pred_check_branch
      %153 = sbr.rel (0) target = $region29
    $region28: #{tpu_custom_call.1} parent=1 // pred_region
      %154 = dma.done [#allocation5], 128
    $region29: #{tpu_custom_call.1} parent=1 // pred_fallthru
      _
    %155 = vsyncpa [#allocation3], 1
    %156 = vsyncpa [#allocation5], 1

</llo_original>
